<compile_context>
chip_gen: v7x
topology: tpu7x:2x2x1
jax: 0.10.0
libtpu: 0.0.40
codegen_flags: <defaults>
</compile_context>

<pallas_src>
import math

import jax
import jax.numpy as jnp
from jax.experimental import pallas as pl
from jax.experimental.pallas import tpu as pltpu

SEQ_LEN = 2        # number of segment embeddings (nn.Embedding rows)
DIM_MODEL = 128    # module default
S1 = 8             # x1 sequence length (before SEP append)
S2 = 8             # x2 sequence length
BATCH = 2


# ----------------------------------------------------------------------------
# Pallas kernel: whole forward in one invocation.
#   x1_ref: (S1*B, D)   x2_ref: (S2*B, D)   w_ref: (2, D)
#   o1_ref: ((S1+1)*B, D)   o2_ref: (S2*B, D)
# ----------------------------------------------------------------------------
def segment_embedding_kernel(x1_ref, x2_ref, w_ref, o1_ref, o2_ref):
    inv_sqrt_d = 1.0 / math.sqrt(DIM_MODEL)
    w0 = w_ref[0:1, :] * inv_sqrt_d            # (1, D) segment-0 embedding
    w1 = w_ref[1:2, :] * inv_sqrt_d            # (1, D) segment-1 embedding

    n1 = x1_ref.shape[0]                       # S1 * B (static)
    n_sep = o1_ref.shape[0] - n1               # B appended SEP rows

    # x1 rows + segment-0 embedding
    o1_ref[0:n1, :] = x1_ref[...] + w0
    # appended SEP rows: zeros + segment-0 embedding
    o1_ref[n1:, :] = jnp.broadcast_to(w0, (n_sep, DIM_MODEL))
    # x2 rows + segment-1 embedding
    o2_ref[...] = x2_ref[...] + w1


# ----------------------------------------------------------------------------
# Wrapper: PyTorch layout (S, B, D) in/out; flatten rows for the kernel.
# ----------------------------------------------------------------------------
def segment_embedding_forward(x1, x2, weight):
    """x1: (S1, B, D), x2: (S2, B, D), weight: (2, D)
       -> (x1_out: (S1+1, B, D), x2_out: (S2, B, D))"""
    s1, b, d = x1.shape
    s2 = x2.shape[0]
    x1f = x1.reshape(s1 * b, d).astype(jnp.float32)
    x2f = x2.reshape(s2 * b, d).astype(jnp.float32)
    w = weight.astype(jnp.float32)

    vmem = lambda: pl.BlockSpec(memory_space=pltpu.MemorySpace.VMEM)
    o1f, o2f = pl.pallas_call(
        segment_embedding_kernel,
        out_shape=(
            jax.ShapeDtypeStruct(((s1 + 1) * b, d), jnp.float32),
            jax.ShapeDtypeStruct((s2 * b, d), jnp.float32),
        ),
        in_specs=[vmem(), vmem(), vmem()],
        out_specs=(vmem(), vmem()),
    )(x1f, x2f, w)

    return o1f.reshape(s1 + 1, b, d), o2f.reshape(s2, b, d)


# ----------------------------------------------------------------------------
# Pure-JAX reference (mirrors the PyTorch module) for correctness check.
# ----------------------------------------------------------------------------
def reference_forward(x1, x2, weight):
    d = x1.shape[-1]
    sep = jnp.zeros((1, x1.shape[1], d), x1.dtype)
    x1c = jnp.concatenate([x1, sep], axis=0)
    o1 = x1c + weight[0] / math.sqrt(d)
    o2 = x2 + weight[1] / math.sqrt(d)
    return o1, o2


if __name__ == "__main__":
    key = jax.random.PRNGKey(0)
    k1, k2, kw = jax.random.split(key, 3)
    # PyTorch convention: (seq, batch, dim_model)
    x1 = jax.random.normal(k1, (S1, BATCH, DIM_MODEL), jnp.float32)
    x2 = jax.random.normal(k2, (S2, BATCH, DIM_MODEL), jnp.float32)
    # nn.Embedding(seq_len, dim_model).weight ~ N(0, 1)
    weight = jax.random.normal(kw, (SEQ_LEN, DIM_MODEL), jnp.float32)

    o1, o2 = segment_embedding_forward(x1, x2, weight)
    o1 = jax.block_until_ready(o1)
    o2 = jax.block_until_ready(o2)

    r1, r2 = reference_forward(x1, x2, weight)
    assert o1.shape == (S1 + 1, BATCH, DIM_MODEL)
    assert o2.shape == (S2, BATCH, DIM_MODEL)
    assert jnp.allclose(o1, r1, rtol=1e-6, atol=1e-6), (
        float(jnp.max(jnp.abs(o1 - r1))))
    assert jnp.allclose(o2, r2, rtol=1e-6, atol=1e-6), (
        float(jnp.max(jnp.abs(o2 - r2))))
    print("KERNEL_OK")
</pallas_src>

<mosaic_0001>
module attributes {stable_mosaic.version = 11 : i64} {
  func.func @segment_embedding_kernel(%arg0: memref<16x128xf32, #tpu.memory_space<vmem>>, %arg1: memref<16x128xf32, #tpu.memory_space<vmem>>, %arg2: memref<2x128xf32, #tpu.memory_space<vmem>>, %arg3: memref<18x128xf32, #tpu.memory_space<vmem>>, %arg4: memref<16x128xf32, #tpu.memory_space<vmem>>) attributes {dimension_semantics = [], scalar_prefetch = 0 : i64, scratch_operands = 0 : i64, tpu.core_type = #tpu.core_type<tc>} {
    %c0 = arith.constant 0 : index
    %c0_0 = arith.constant 0 : index
    %0 = vector.load %arg2[%c0, %c0_0] : memref<2x128xf32, #tpu.memory_space<vmem>>, vector<1x128xf32>
    %cst = arith.constant 0.0883883461 : f32
    %1 = vector.broadcast %cst : f32 to vector<1x128xf32>
    %2 = arith.mulf %0, %1 : vector<1x128xf32>
    %c1 = arith.constant 1 : index
    %c0_1 = arith.constant 0 : index
    %3 = vector.load %arg2[%c1, %c0_1] : memref<2x128xf32, #tpu.memory_space<vmem>>, vector<1x128xf32>
    %cst_2 = arith.constant 0.0883883461 : f32
    %4 = vector.broadcast %cst_2 : f32 to vector<1x128xf32>
    %5 = arith.mulf %3, %4 : vector<1x128xf32>
    %c0_3 = arith.constant 0 : index
    %c0_4 = arith.constant 0 : index
    %6 = vector.load %arg0[%c0_3, %c0_4] : memref<16x128xf32, #tpu.memory_space<vmem>>, vector<16x128xf32>
    %7 = vector.broadcast %2 : vector<1x128xf32> to vector<16x128xf32>
    %8 = arith.addf %6, %7 : vector<16x128xf32>
    %c0_5 = arith.constant 0 : index
    %c0_6 = arith.constant 0 : index
    %9 = vector.load %arg3[%c0_5, %c0_6] : memref<18x128xf32, #tpu.memory_space<vmem>>, vector<16x128xf32>
    tpu.vector_store %arg3[%c0_5, %c0_6], %8 {strides = array<i32>} : memref<18x128xf32, #tpu.memory_space<vmem>>, vector<16x128xf32>,
    %10 = vector.shape_cast %2 : vector<1x128xf32> to vector<1x128xf32>
    %11 = vector.broadcast %10 : vector<1x128xf32> to vector<2x128xf32>
    %c16 = arith.constant 16 : index
    %c0_7 = arith.constant 0 : index
    %12 = vector.load %arg3[%c16, %c0_7] : memref<18x128xf32, #tpu.memory_space<vmem>>, vector<2x128xf32>
    tpu.vector_store %arg3[%c16, %c0_7], %11 {strides = array<i32>} : memref<18x128xf32, #tpu.memory_space<vmem>>, vector<2x128xf32>,
    %c0_8 = arith.constant 0 : index
    %c0_9 = arith.constant 0 : index
    %13 = vector.load %arg1[%c0_8, %c0_9] : memref<16x128xf32, #tpu.memory_space<vmem>>, vector<16x128xf32>
    %14 = vector.broadcast %5 : vector<1x128xf32> to vector<16x128xf32>
    %15 = arith.addf %13, %14 : vector<16x128xf32>
    %c0_10 = arith.constant 0 : index
    %c0_11 = arith.constant 0 : index
    %16 = vector.load %arg4[%c0_10, %c0_11] : memref<16x128xf32, #tpu.memory_space<vmem>>, vector<16x128xf32>
    tpu.vector_store %arg4[%c0_10, %c0_11], %15 {strides = array<i32>} : memref<16x128xf32, #tpu.memory_space<vmem>>, vector<16x128xf32>,
    return
  }
}

</mosaic_0001>

<llo_original>
// kernel: tpu_custom_call.1
$region0: #{tpu_custom_call.1}
  #allocation0 [shape = 'u32[]', space=smem, size = 0x4, offset = 0x4, fixed_abs, tag = 'smem constant byte address 0x4 - core index']
  #allocation1 [shape = 'u32[144,128]{1,0:T(1,128)}', space=vmem, size = 0x12000, scoped, tag = 'internal scratch']
  %s0 = inlined_call_operand.hbm [shape: f32[16,128], index: 0, kind: input, shape index: {}]
  %s1 = inlined_call_operand.hbm [shape: f32[16,128], index: 1, kind: input, shape index: {}]
  %s2 = inlined_call_operand.vmem [shape: f32[2,128], index: 2, kind: input, shape index: {}]
  %s3 = inlined_call_operand.hbm [shape: f32[18,128], index: 3, kind: output, shape index: {0}]
  %s4 = inlined_call_operand.hbm [shape: f32[16,128], index: 4, kind: output, shape index: {1}]
  %5 = xla_tuple %s3, %s4
  %s6 = sld [smem:[#allocation0]]
  $region38: #{tpu_custom_call.1} parent=0
    _
  %s8 = ssub.s32 1, %s6
  %s9 = scalar_select 0, %s8, %s6
  $region1: #{tpu_custom_call.1} parent=0
    #allocation2 [shape = 'u8[8192]{0}', space=vmem, size = 0x2000, scoped, tag = 'input window, operand 0, single buffered']
    #allocation3 [shape = 's32[1]{0}', space=sflag, size = 0x4, scoped, tag = 'scoped memory for tpu_custom_call.1']
    #allocation4 [shape = 's32[1]{0}', space=sflag, size = 0x4, scoped, tag = 'scoped memory for tpu_custom_call.1']
    #allocation5 [shape = 'u8[8192]{0}', space=vmem, size = 0x2000, scoped, tag = 'input window, operand 1, single buffered']
    #allocation6 [shape = 's32[1]{0}', space=sflag, size = 0x4, scoped, tag = 'scoped memory for tpu_custom_call.1']
    #allocation7 [shape = 'u8[12288]{0}', space=vmem, size = 0x3000, scoped, tag = 'output window, operand 0, single buffered']
    #allocation8 [shape = 'u8[8192]{0}', space=vmem, size = 0x2000, scoped, tag = 'output window, operand 1, single buffered']
    #allocation9 [shape = 's32[1]{0}', space=sflag, size = 0x4, scoped, tag = 'scoped memory for tpu_custom_call.1']
    %10 = vsyncpa [#allocation3], 0
    %11 = vsyncpa [#allocation6], 0
    %12 = vsyncpa [#allocation4], 0
    %13 = vsyncpa [#allocation9], 0
    // Predicated region
    $region2: #{tpu_custom_call.1} parent=1 // pred_check
      _
    $region3: #{tpu_custom_call.1} parent=1 // pred_check_branch
      %15 = sbr.rel (0) target = $region5
    $region4: #{tpu_custom_call.1} parent=1 // pred_region
      %s17 = ssub.s32 256, 256
      %18 = vsyncadd [#allocation3], %s17
      %s19 = sshll.u32 [#allocation2], 4
      %s20 = int_to_ptr.vmem [resolvable:$true] %s19
      %25 = dma.hbm_to_vmem [thread:$0]  %s0, 256, %s20, [#allocation3], 128, 128, 8
    $region5: #{tpu_custom_call.1} parent=1 // pred_fallthru
      _
    // Predicated region
    $region6: #{tpu_custom_call.1} parent=1 // pred_check
      _
    $region7: #{tpu_custom_call.1} parent=1 // pred_check_branch
      %27 = sbr.rel (0) target = $region9
    $region8: #{tpu_custom_call.1} parent=1 // pred_region
      %s29 = ssub.s32 256, 256
      %30 = vsyncadd [#allocation6], %s29
      %s31 = sshll.u32 [#allocation5], 4
      %s32 = int_to_ptr.vmem [resolvable:$true] %s31
      %37 = dma.hbm_to_vmem [thread:$0]  %s1, 256, %s32, [#allocation6], 128, 128, 8
    $region9: #{tpu_custom_call.1} parent=1 // pred_fallthru
      _
    // Predicated region
    $region10: #{tpu_custom_call.1} parent=1 // pred_check
      _
    $region11: #{tpu_custom_call.1} parent=1 // pred_check_branch
      %39 = sbr.rel (0) target = $region13
    $region12: #{tpu_custom_call.1} parent=1 // pred_region
      _
    $region13: #{tpu_custom_call.1} parent=1 // pred_fallthru
      _
    // Predicated region
    $region14: #{tpu_custom_call.1} parent=1 // pred_check
      _
    $region15: #{tpu_custom_call.1} parent=1 // pred_check_branch
      %41 = sbr.rel (0) target = $region17
    $region16: #{tpu_custom_call.1} parent=1 // pred_region
      %42 = dma.done [#allocation3], 256
    $region17: #{tpu_custom_call.1} parent=1 // pred_fallthru
      _
    // Predicated region
    $region18: #{tpu_custom_call.1} parent=1 // pred_check
      _
    $region19: #{tpu_custom_call.1} parent=1 // pred_check_branch
      %44 = sbr.rel (0) target = $region21
    $region20: #{tpu_custom_call.1} parent=1 // pred_region
      %45 = dma.done [#allocation6], 256
    $region21: #{tpu_custom_call.1} parent=1 // pred_fallthru
      _
    %v46 = vld [vmem:[%s2] sm:$0x1]
    %v47 = vmul.f32 %v46, 0.088388346
    %v48 = vld [vmem:[%s2 + $0x1] sm:$0x1]
    %v49 = vmul.f32 %v48, 0.088388346
    %v50 = vld [vmem:[#allocation2] sm:$0xff]
    %v51 = vld [vmem:[#allocation2 + $0x8] sm:$0xff]
    %v52 = vlaneseq
    %v53 = vshrl.u32 %v52, 7
    %v54 = vsub.s32 0, %v53
    %v55 = vrot.slane %v47, %v54
    %v56 = vadd.f32 %v50, %v55
    %v57 = vadd.f32 %v51, %v55
    %58 = vst [vmem:[#allocation7] sm:$0xff] %v56
    %59 = vst [vmem:[#allocation7 + $0x8] sm:$0xff] %v57
    %60 = vst [vmem:[#allocation7 + $0x10] sm:$0x3] %v55
    %v61 = vld [vmem:[#allocation5] sm:$0xff]
    %v62 = vld [vmem:[#allocation5 + $0x8] sm:$0xff]
    %v63 = vlaneseq
    %v64 = vshrl.u32 %v63, 7
    %v65 = vsub.s32 0, %v64
    %v66 = vrot.slane %v49, %v65
    %v67 = vadd.f32 %v61, %v66
    %v68 = vadd.f32 %v62, %v66
    %69 = vst [vmem:[#allocation8] sm:$0xff] %v67
    %70 = vst [vmem:[#allocation8 + $0x8] sm:$0xff] %v68
    // Predicated region
    $region22: #{tpu_custom_call.1} parent=1 // pred_check
      _
    $region23: #{tpu_custom_call.1} parent=1 // pred_check_branch
      %72 = sbr.rel (0) target = $region25
    $region24: #{tpu_custom_call.1} parent=1 // pred_region
      %s74 = ssub.s32 384, 384
      %75 = vsyncadd [#allocation4], %s74
      %s76 = sshll.u32 [#allocation7], 4
      %s77 = int_to_ptr.vmem [resolvable:$true] %s76
      %82 = dma.vmem_to_hbm [thread:$0]  %s77, 384, %s3, [#allocation4], 128, 128, 8
    $region25: #{tpu_custom_call.1} parent=1 // pred_fallthru
      _
    // Predicated region
    $region26: #{tpu_custom_call.1} parent=1 // pred_check
      _
    $region27: #{tpu_custom_call.1} parent=1 // pred_check_branch
      %84 = sbr.rel (0) target = $region29
    $region28: #{tpu_custom_call.1} parent=1 // pred_region
      %s86 = ssub.s32 256, 256
      %87 = vsyncadd [#allocation9], %s86
      %s88 = sshll.u32 [#allocation8], 4
      %s89 = int_to_ptr.vmem [resolvable:$true] %s88
      %94 = dma.vmem_to_hbm [thread:$0]  %s89, 256, %s4, [#allocation9], 128, 128, 8
    $region29: #{tpu_custom_call.1} parent=1 // pred_fallthru
      _
    // Predicated region
    $region30: #{tpu_custom_call.1} parent=1 // pred_check
      _
    $region31: #{tpu_custom_call.1} parent=1 // pred_check_branch
      %96 = sbr.rel (0) target = $region33
    $region32: #{tpu_custom_call.1} parent=1 // pred_region
      %97 = dma.done [#allocation4], 384
    $region33: #{tpu_custom_call.1} parent=1 // pred_fallthru
      _
    // Predicated region
    $region34: #{tpu_custom_call.1} parent=1 // pred_check
      _
    $region35: #{tpu_custom_call.1} parent=1 // pred_check_branch
      %99 = sbr.rel (0) target = $region37
    $region36: #{tpu_custom_call.1} parent=1 // pred_region
      %100 = dma.done [#allocation9], 256
    $region37: #{tpu_custom_call.1} parent=1 // pred_fallthru
      _
    %101 = vsyncpa [#allocation3], 1
    %102 = vsyncpa [#allocation6], 1
    %103 = vsyncpa [#allocation4], 1
    %104 = vsyncpa [#allocation9], 1

</llo_original>
